<compile_context>
chip_gen: v6e
topology: v6e:2x2x1
jax: 0.10.0
libtpu: 0.0.40
codegen_flags: <defaults>
</compile_context>

<pallas_src>
import functools

import jax
import jax.numpy as jnp
from jax import lax
from jax.experimental import pallas as pl
from jax.experimental.pallas import tpu as pltpu


def _round_up(x, m):
    return ((x + m - 1) // m) * m


def _gelu_exact(x):
    # PyTorch nn.GELU() default is the exact erf formulation (f32 epilogue).
    return 0.5 * x * (1.0 + lax.erf(x * 0.7071067811865476))


def _tpu_vmem_bytes():
    try:
        return int(pltpu.get_tpu_info().vmem_capacity_bytes)
    except Exception:  # interpret mode / non-TPU fallback
        return 128 << 20


def _largest_tile(total, cap):
    # Largest multiple of 128 that divides `total` (itself a multiple of 128)
    # and is <= cap.  Guarantees the grid axis covers `total` with no zero slab.
    cap = max(128, min(cap, total))
    cap = (cap // 128) * 128
    for c in range(cap, 127, -128):
        if total % c == 0:
            return c
    return 128


def _footprint(tm_e, th_e, tn_e, D_in_p, x_isz, w_isz, o_isz):
    # Per-step VMEM footprint: double-buffered pipelined tiles + f32 accumulator.
    dbl = 2
    return (dbl * (tm_e * D_in_p * x_isz        # x tile (resident across j)
                   + D_in_p * th_e * w_isz      # W1 slab
                   + 8 * th_e * 4               # b1 (f32, 8-sublane padded)
                   + th_e * tn_e * w_isz        # W2 slab
                   + 8 * tn_e * 4               # b2
                   + tm_e * tn_e * o_isz)       # output tile
            + tm_e * tn_e * 4)                  # f32 accumulator scratch


def _choose_tiles(M, D_in_p, D_hid_p, D_out_p, x_isz, w_isz, o_isz, tm, th, budget):
    tm_eff = min(_round_up(tm, 8), _round_up(M, 8))
    th_eff = _largest_tile(D_hid_p, th)
    tn_eff = D_out_p  # prefer untiled D_out: fc1+GELU computed exactly once

    def fp():
        return _footprint(tm_eff, th_eff, tn_eff, D_in_p, x_isz, w_isz, o_isz)

    # Shrink the D_out tile first (adds fc1 recompute but keeps the
    # roofline-critical row tile large), then the row tile, then the hidden slab.
    while fp() > budget and tn_eff > 128:
        tn_eff = _largest_tile(D_out_p, tn_eff - 128)
    while fp() > budget and tm_eff > 128:
        tm_eff = max(128, (tm_eff // 2 // 8) * 8)
    while fp() > budget and th_eff > 128:
        th_eff = _largest_tile(D_hid_p, th_eff - 128)
    return tm_eff, th_eff, tn_eff


def mlp_kernel(x_ref, w1_ref, b1_ref, w2_ref, b2_ref, o_ref, acc_ref):
    # Grid = (row_tiles, dout_tiles, hidden_tiles); hidden axis = fc2 reduction.
    # x_ref:  (tm, D_in_p)            -- resident across the hidden axis
    # w1_ref: (D_in_p, th), b1_ref: (1, th)  [f32]
    # w2_ref: (th, tn),     b2_ref: (1, tn)  [f32]
    # o_ref:  (tm, tn), acc_ref: (tm, tn) f32 scratch
    j = pl.program_id(2)

    @pl.when(j == 0)
    def _():
        # Fold the fc2 bias into the accumulator init (saves one epilogue pass).
        acc_ref[...] = jnp.broadcast_to(
            b2_ref[...].astype(jnp.float32), acc_ref.shape)

    # fc1 slab: native-dtype operands straight to the MXU, f32 accumulation.
    h = jnp.dot(x_ref[...], w1_ref[...], preferred_element_type=jnp.float32)
    h = _gelu_exact(h + b1_ref[...].astype(jnp.float32))

    # fc2 partial product for this hidden slab, accumulated in f32 scratch.
    acc_ref[...] += jnp.dot(h.astype(w2_ref.dtype), w2_ref[...],
                            preferred_element_type=jnp.float32)

    @pl.when(j == pl.num_programs(2) - 1)
    def _():
        # TODO(synk): dropout p=0.0 is identity; a real dropout would need
        # pltpu.prng_seed + pltpu.prng_random_bits masking here.
        o_ref[...] = acc_ref[...].astype(o_ref.dtype)


@functools.partial(jax.jit, static_argnames=("tm", "th", "tn", "compute_dtype"))
def mlp_forward(x, w1, b1, w2, b2, *, tm=512, th=512, tn=None, compute_dtype=None):
    B, N, D_in = x.shape
    D_hid = w1.shape[1]
    D_out = w2.shape[1]
    M = B * N

    out_dtype = x.dtype
    if compute_dtype is not None:
        # Production path: bf16 operands (native MXU dtype, half the weight DMA
        # bytes). Biases stay f32; accumulation / epilogue is f32 regardless.
        x = x.astype(compute_dtype)
        w1 = w1.astype(compute_dtype)
        w2 = w2.astype(compute_dtype)

    # Lane-dense / sublane-aligned padded dims.
    D_in_p = _round_up(D_in, 128)
    D_hid_p = _round_up(D_hid, 128)
    D_out_p = _round_up(D_out, 128)

    x_isz = jnp.dtype(x.dtype).itemsize
    w_isz = jnp.dtype(w1.dtype).itemsize
    o_isz = jnp.dtype(out_dtype).itemsize

    # Generation-aware VMEM budget (per TensorCore).
    vmem_cap = _tpu_vmem_bytes()
    if vmem_cap <= (64 << 20) + (1 << 20):      # v7x: 64 MiB per TC
        budget, hard_cap = 44 << 20, 56 << 20
    else:                                        # v5e / v6e: 128 MiB
        budget, hard_cap = 96 << 20, 112 << 20

    tm_eff, th_eff, tn_eff = _choose_tiles(
        M, D_in_p, D_hid_p, D_out_p, x_isz, w_isz, o_isz, tm, th, budget)
    if tn is not None:
        tn_eff = _largest_tile(D_out_p, tn)

    M_p = _round_up(M, tm_eff)

    # Zero-pad (zeros are inert through both matmuls / GELU; sliced off below).
    x2d = jnp.pad(x.reshape(M, D_in), ((0, M_p - M), (0, D_in_p - D_in)))
    w1_p = jnp.pad(w1, ((0, D_in_p - D_in), (0, D_hid_p - D_hid)))
    b1_p = jnp.pad(b1.astype(jnp.float32).reshape(1, -1),
                   ((0, 0), (0, D_hid_p - D_hid)))
    w2_p = jnp.pad(w2, ((0, D_hid_p - D_hid), (0, D_out_p - D_out)))
    b2_p = jnp.pad(b2.astype(jnp.float32).reshape(1, -1),
                   ((0, 0), (0, D_out_p - D_out)))

    est = _footprint(tm_eff, th_eff, tn_eff, D_in_p, x_isz, w_isz, o_isz)
    vmem_limit = int(min(hard_cap, max(32 << 20, est + (8 << 20))))

    grid = (M_p // tm_eff, D_out_p // tn_eff, D_hid_p // th_eff)

    out2d = pl.pallas_call(
        mlp_kernel,
        out_shape=jax.ShapeDtypeStruct((M_p, D_out_p), out_dtype),
        grid_spec=pltpu.PrefetchScalarGridSpec(
            num_scalar_prefetch=0,
            grid=grid,
            in_specs=[
                pl.BlockSpec((tm_eff, D_in_p), lambda i, n, j: (i, 0)),   # x tile
                pl.BlockSpec((D_in_p, th_eff), lambda i, n, j: (0, j)),   # W1 slab
                pl.BlockSpec((1, th_eff), lambda i, n, j: (0, j)),        # b1 slab
                pl.BlockSpec((th_eff, tn_eff), lambda i, n, j: (j, n)),   # W2 slab
                pl.BlockSpec((1, tn_eff), lambda i, n, j: (0, n)),        # b2 slab
            ],
            out_specs=pl.BlockSpec((tm_eff, tn_eff), lambda i, n, j: (i, n)),
            scratch_shapes=[pltpu.VMEM((tm_eff, tn_eff), jnp.float32)],
        ),
        compiler_params=pltpu.CompilerParams(
            dimension_semantics=("parallel", "parallel", "arbitrary"),
            vmem_limit_bytes=vmem_limit,
        ),
    )(x2d, w1_p, b1_p, w2_p, b2_p)

    return out2d[:M, :D_out].reshape(B, N, D_out)


def init_mlp_params(key, in_feat, hid_feat=None, out_feat=None, dtype=jnp.float32):
    # Mirrors nn.Linear default init: U(-1/sqrt(fan_in), 1/sqrt(fan_in)).
    if not hid_feat:
        hid_feat = in_feat
    if not out_feat:
        out_feat = in_feat
    k1, k2, k3, k4 = jax.random.split(key, 4)
    bound1 = 1.0 / (in_feat ** 0.5)
    bound2 = 1.0 / (hid_feat ** 0.5)
    w1 = jax.random.uniform(k1, (in_feat, hid_feat), dtype, -bound1, bound1)
    b1 = jax.random.uniform(k2, (hid_feat,), dtype, -bound1, bound1)
    w2 = jax.random.uniform(k3, (hid_feat, out_feat), dtype, -bound2, bound2)
    b2 = jax.random.uniform(k4, (out_feat,), dtype, -bound2, bound2)
    return w1, b1, w2, b2


def _ref(x, w1, b1, w2, b2):
    return jax.nn.gelu(x @ w1 + b1, approximate=False) @ w2 + b2


if __name__ == "__main__":
    key = jax.random.PRNGKey(0)

    # Test 1: small, unaligned dims (exercises padding path), single grid step.
    k_x, k_p, key = jax.random.split(key, 3)
    B, N, in_feat, hid_feat, out_feat = 2, 8, 32, 64, 32
    x = jax.random.normal(k_x, (B, N, in_feat), dtype=jnp.float32)
    w1, b1, w2, b2 = init_mlp_params(k_p, in_feat, hid_feat, out_feat)
    out = mlp_forward(x, w1, b1, w2, b2)
    jax.block_until_ready(out)
    ref = _ref(x, w1, b1, w2, b2)
    assert out.shape == (B, N, out_feat)
    assert jnp.allclose(out, ref, atol=1e-4, rtol=1e-4), "mismatch vs ref (test 1)"

    # Test 2: 128-aligned dims with multiple row tiles and hidden slabs
    # (exercises the accumulator / hidden-dim streaming path).
    k_x, k_p, key = jax.random.split(key, 3)
    B, N, in_feat, hid_feat, out_feat = 4, 128, 128, 256, 128
    x = jax.random.normal(k_x, (B, N, in_feat), dtype=jnp.float32)
    w1, b1, w2, b2 = init_mlp_params(k_p, in_feat, hid_feat, out_feat)
    out = mlp_forward(x, w1, b1, w2, b2, tm=256, th=128)
    jax.block_until_ready(out)
    ref = _ref(x, w1, b1, w2, b2)
    assert out.shape == (B, N, out_feat)
    assert jnp.allclose(out, ref, atol=1e-4, rtol=1e-4), "mismatch vs ref (test 2)"

    # Test 3: forced D_out tiling (3-D grid with tn < D_out_p), as used when the
    # untiled footprint would exceed the v7x 64 MiB VMEM budget.
    k_x, k_p, key = jax.random.split(key, 3)
    B, N, in_feat, hid_feat, out_feat = 2, 64, 128, 256, 256
    x = jax.random.normal(k_x, (B, N, in_feat), dtype=jnp.float32)
    w1, b1, w2, b2 = init_mlp_params(k_p, in_feat, hid_feat, out_feat)
    out = mlp_forward(x, w1, b1, w2, b2, tm=128, th=128, tn=128)
    jax.block_until_ready(out)
    ref = _ref(x, w1, b1, w2, b2)
    assert out.shape == (B, N, out_feat)
    assert jnp.allclose(out, ref, atol=1e-4, rtol=1e-4), "mismatch vs ref (test 3)"

    # Test 4: bf16 compute path (production config: bf16 operands, f32 epilogue).
    k_x, k_p, key = jax.random.split(key, 3)
    B, N, in_feat, hid_feat, out_feat = 4, 128, 128, 256, 128
    x = jax.random.normal(k_x, (B, N, in_feat), dtype=jnp.float32)
    w1, b1, w2, b2 = init_mlp_params(k_p, in_feat, hid_feat, out_feat)
    out = mlp_forward(x, w1, b1, w2, b2, tm=256, th=128,
                      compute_dtype=jnp.bfloat16)
    jax.block_until_ready(out)
    ref = _ref(x, w1, b1, w2, b2)
    assert out.shape == (B, N, out_feat)
    assert jnp.allclose(out, ref, atol=5e-2, rtol=5e-2), "mismatch vs ref (test 4)"

    print("KERNEL_OK")
</pallas_src>

<mosaic_0001>
module attributes {stable_mosaic.version = 11 : i64} {
  func.func @mlp_kernel(%arg0: i32, %arg1: i32, %arg2: i32, %arg3: memref<16x128xf32, #tpu.memory_space<vmem>>, %arg4: memref<128x128xf32, #tpu.memory_space<vmem>>, %arg5: memref<1x128xf32, #tpu.memory_space<vmem>>, %arg6: memref<128x128xf32, #tpu.memory_space<vmem>>, %arg7: memref<1x128xf32, #tpu.memory_space<vmem>>, %arg8: memref<16x128xf32, #tpu.memory_space<vmem>>, %arg9: memref<16x128xf32, #tpu.memory_space<vmem>>) attributes {dimension_semantics = [#tpu.dimension_semantics<parallel>, #tpu.dimension_semantics<parallel>, #tpu.dimension_semantics<arbitrary>], iteration_bounds = array<i64: 1, 1, 1>, scalar_prefetch = 0 : i64, scratch_operands = 1 : i64, tpu.core_type = #tpu.core_type<tc>, window_params = [{transform_indices = @transform_0, window_bounds = array<i64: 16, 128>}, {transform_indices = @transform_1, window_bounds = array<i64: 128, 128>}, {transform_indices = @transform_2, window_bounds = array<i64: 1, 128>}, {transform_indices = @transform_3, window_bounds = array<i64: 128, 128>}, {transform_indices = @transform_4, window_bounds = array<i64: 1, 128>}, {transform_indices = @transform_5, window_bounds = array<i64: 16, 128>}]} {
    %c0_i32 = arith.constant 0 : i32
    %0 = arith.cmpi eq, %arg2, %c0_i32 : i32
    %1 = arith.extui %0 : i1 to i32
    %c0_i32_0 = arith.constant 0 : i32
    %2 = arith.cmpi ne, %1, %c0_i32_0 : i32
    scf.if %2 {
      %c0_18 = arith.constant 0 : index
      %c0_19 = arith.constant 0 : index
      %25 = vector.load %arg7[%c0_18, %c0_19] : memref<1x128xf32, #tpu.memory_space<vmem>>, vector<1x128xf32>
      %26 = vector.shape_cast %25 : vector<1x128xf32> to vector<1x128xf32>
      %27 = vector.broadcast %26 : vector<1x128xf32> to vector<16x128xf32>
      %c0_20 = arith.constant 0 : index
      %c0_21 = arith.constant 0 : index
      %28 = vector.load %arg9[%c0_20, %c0_21] : memref<16x128xf32, #tpu.memory_space<vmem>>, vector<16x128xf32>
      tpu.vector_store %arg9[%c0_20, %c0_21], %27 {strides = array<i32>} : memref<16x128xf32, #tpu.memory_space<vmem>>, vector<16x128xf32>,
    } else {
    }
    %c0 = arith.constant 0 : index
    %c0_1 = arith.constant 0 : index
    %3 = vector.load %arg3[%c0, %c0_1] : memref<16x128xf32, #tpu.memory_space<vmem>>, vector<16x128xf32>
    %c0_2 = arith.constant 0 : index
    %c0_3 = arith.constant 0 : index
    %4 = vector.load %arg4[%c0_2, %c0_3] : memref<128x128xf32, #tpu.memory_space<vmem>>, vector<128x128xf32>
    %cst = arith.constant dense<0.000000e+00> : vector<16x128xf32>
    %5 = tpu.matmul %3, %4, %cst {dimension_numbers = #tpu.dot_dimension_numbers<[1], [0], [0], [1], [0, 0, 1, 1], [], []>} : vector<16x128xf32>, vector<128x128xf32>, vector<16x128xf32> -> vector<16x128xf32>
    %c0_4 = arith.constant 0 : index
    %c0_5 = arith.constant 0 : index
    %6 = vector.load %arg5[%c0_4, %c0_5] : memref<1x128xf32, #tpu.memory_space<vmem>>, vector<1x128xf32>
    %7 = vector.broadcast %6 : vector<1x128xf32> to vector<16x128xf32>
    %8 = arith.addf %5, %7 : vector<16x128xf32>
    %cst_6 = arith.constant 5.000000e-01 : f32
    %9 = vector.broadcast %cst_6 : f32 to vector<16x128xf32>
    %10 = arith.mulf %9, %8 : vector<16x128xf32>
    %cst_7 = arith.constant 0.707106769 : f32
    %11 = vector.broadcast %cst_7 : f32 to vector<16x128xf32>
    %12 = arith.mulf %8, %11 : vector<16x128xf32>
    %13 = math.erf %12 : vector<16x128xf32>
    %cst_8 = arith.constant 1.000000e+00 : f32
    %14 = vector.broadcast %cst_8 : f32 to vector<16x128xf32>
    %15 = arith.addf %14, %13 : vector<16x128xf32>
    %16 = arith.mulf %10, %15 : vector<16x128xf32>
    %c0_9 = arith.constant 0 : index
    %c0_10 = arith.constant 0 : index
    %17 = vector.load %arg9[%c0_9, %c0_10] : memref<16x128xf32, #tpu.memory_space<vmem>>, vector<16x128xf32>
    %c0_11 = arith.constant 0 : index
    %c0_12 = arith.constant 0 : index
    %18 = vector.load %arg6[%c0_11, %c0_12] : memref<128x128xf32, #tpu.memory_space<vmem>>, vector<128x128xf32>
    %cst_13 = arith.constant dense<0.000000e+00> : vector<16x128xf32>
    %19 = tpu.matmul %16, %18, %cst_13 {dimension_numbers = #tpu.dot_dimension_numbers<[1], [0], [0], [1], [0, 0, 1, 1], [], []>} : vector<16x128xf32>, vector<128x128xf32>, vector<16x128xf32> -> vector<16x128xf32>
    %20 = arith.addf %17, %19 : vector<16x128xf32>
    %c0_14 = arith.constant 0 : index
    %c0_15 = arith.constant 0 : index
    %21 = vector.load %arg9[%c0_14, %c0_15] : memref<16x128xf32, #tpu.memory_space<vmem>>, vector<16x128xf32>
    tpu.vector_store %arg9[%c0_14, %c0_15], %20 {strides = array<i32>} : memref<16x128xf32, #tpu.memory_space<vmem>>, vector<16x128xf32>,
    %c0_i32_16 = arith.constant 0 : i32
    %22 = arith.cmpi eq, %arg2, %c0_i32_16 : i32
    %23 = arith.extui %22 : i1 to i32
    %c0_i32_17 = arith.constant 0 : i32
    %24 = arith.cmpi ne, %23, %c0_i32_17 : i32
    scf.if %24 {
      %c0_18 = arith.constant 0 : index
      %c0_19 = arith.constant 0 : index
      %25 = vector.load %arg9[%c0_18, %c0_19] : memref<16x128xf32, #tpu.memory_space<vmem>>, vector<16x128xf32>
      %c0_20 = arith.constant 0 : index
      %c0_21 = arith.constant 0 : index
      %26 = vector.load %arg8[%c0_20, %c0_21] : memref<16x128xf32, #tpu.memory_space<vmem>>, vector<16x128xf32>
      tpu.vector_store %arg8[%c0_20, %c0_21], %25 {strides = array<i32>} : memref<16x128xf32, #tpu.memory_space<vmem>>, vector<16x128xf32>,
    } else {
    }
    return
  }
  func.func @transform_0(%arg0: i32, %arg1: i32, %arg2: i32) -> (i32, i32) {
    %c0_i32 = arith.constant 0 : i32
    %c0_i32_0 = arith.constant 0 : i32
    return %arg0, %c0_i32 : i32, i32
  }
  func.func @transform_1(%arg0: i32, %arg1: i32, %arg2: i32) -> (i32, i32) {
    %c0_i32 = arith.constant 0 : i32
    %c0_i32_0 = arith.constant 0 : i32
    return %c0_i32, %arg2 : i32, i32
  }
  func.func @transform_2(%arg0: i32, %arg1: i32, %arg2: i32) -> (i32, i32) {
    %c0_i32 = arith.constant 0 : i32
    %c0_i32_0 = arith.constant 0 : i32
    return %c0_i32, %arg2 : i32, i32
  }
  func.func @transform_3(%arg0: i32, %arg1: i32, %arg2: i32) -> (i32, i32) {
    %c0_i32 = arith.constant 0 : i32
    return %arg2, %arg1 : i32, i32
  }
  func.func @transform_4(%arg0: i32, %arg1: i32, %arg2: i32) -> (i32, i32) {
    %c0_i32 = arith.constant 0 : i32
    %c0_i32_0 = arith.constant 0 : i32
    return %c0_i32, %arg1 : i32, i32
  }
  func.func @transform_5(%arg0: i32, %arg1: i32, %arg2: i32) -> (i32, i32) {
    %c0_i32 = arith.constant 0 : i32
    return %arg0, %arg1 : i32, i32
  }
}

</mosaic_0001>

<llo_original>
// kernel: mlp_forward.1
$region0: #{mlp_forward.1}
  #allocation0 [shape = 'u32[]', space=smem, size = 0x4, offset = 0x4, fixed_abs, tag = 'smem constant byte address 0x4 - core index']
  #allocation1 [shape = 'u32[144,128]{1,0:T(1,128)}', space=vmem, size = 0x12000, scoped, tag = 'internal scratch']
  #allocation2 [shape = 'f32[16,128]{1,0:T(8,128)}', space=vmem, size = 0x2000, scoped, tag = 'scratch operand']
  %s0 = inlined_call_operand.vmem [shape: f32[16,128], index: 0, kind: input, shape index: {}]
  %s1 = inlined_call_operand.vmem [shape: f32[128,128], index: 1, kind: input, shape index: {}]
  %s2 = inlined_call_operand.vmem [shape: f32[1,128], index: 2, kind: input, shape index: {}]
  %s3 = inlined_call_operand.vmem [shape: f32[128,128], index: 3, kind: input, shape index: {}]
  %s4 = inlined_call_operand.vmem [shape: f32[1,128], index: 4, kind: input, shape index: {}]
  %s5 = inlined_call_operand.vmem [shape: f32[16,128], index: 5, kind: output, shape index: {}]
  %s6 = sld [smem:[#allocation0]]
  $region38: #{mlp_forward.1} parent=0
    _
  %s8 = ssub.s32 1, %s6
  %s9 = scalar_select 0, %s8, %s6
  // Predicated region
  $region2: #{mlp_forward.1} parent=0 // pred_check
    _
  $region3: #{mlp_forward.1} parent=0 // pred_check_branch
    %11 = sbr.rel (0) target = $region5
  $region4: #{mlp_forward.1} parent=0 // pred_region
    _
  $region5: #{mlp_forward.1} parent=0 // pred_fallthru
    _
  // Predicated region
  $region6: #{mlp_forward.1} parent=0 // pred_check
    _
  $region7: #{mlp_forward.1} parent=0 // pred_check_branch
    %13 = sbr.rel (0) target = $region9
  $region8: #{mlp_forward.1} parent=0 // pred_region
    _
  $region9: #{mlp_forward.1} parent=0 // pred_fallthru
    _
  // Predicated region
  $region10: #{mlp_forward.1} parent=0 // pred_check
    _
  $region11: #{mlp_forward.1} parent=0 // pred_check_branch
    %15 = sbr.rel (0) target = $region13
  $region12: #{mlp_forward.1} parent=0 // pred_region
    _
  $region13: #{mlp_forward.1} parent=0 // pred_fallthru
    _
  // Predicated region
  $region14: #{mlp_forward.1} parent=0 // pred_check
    _
  $region15: #{mlp_forward.1} parent=0 // pred_check_branch
    %17 = sbr.rel (0) target = $region17
  $region16: #{mlp_forward.1} parent=0 // pred_region
    _
  $region17: #{mlp_forward.1} parent=0 // pred_fallthru
    _
  // Predicated region
  $region18: #{mlp_forward.1} parent=0 // pred_check
    _
  $region19: #{mlp_forward.1} parent=0 // pred_check_branch
    %19 = sbr.rel (0) target = $region21
  $region20: #{mlp_forward.1} parent=0 // pred_region
    _
  $region21: #{mlp_forward.1} parent=0 // pred_fallthru
    _
  %p20 = scmp.eq.s32.totalorder 0, 0
  // Predicated region
  $region22: #{mlp_forward.1} parent=0 // pred_check
    %p21 = pneg %p20
  $region23: #{mlp_forward.1} parent=0 // pred_check_branch
    %23 = sbr.rel (%p21) target = $region25
  $region24: #{mlp_forward.1} parent=0 // pred_region
    %v24 = vld [vmem:[%s4] sm:$0x1]
    %v26 = vlaneseq
    %v27 = vshrl.u32 %v26, 7
    %v28 = vsub.s32 0, %v27
    %v29 = vrot.slane %v24, %v28
    %31 = vst [vmem:[#allocation2] sm:$0xff] %v29
    %32 = vst [vmem:[#allocation2 + $0x8] sm:$0xff] %v29
  $region25: #{mlp_forward.1} parent=0 // pred_fallthru
    _
  %v33 = vld [vmem:[%s0] sm:$0xff]
  %v34 = vld [vmem:[%s0 + $0x8] sm:$0xff]
  %v35 = vld [vmem:[%s1] sm:$0xff]
  %v36 = vld [vmem:[%s1 + $0x8] sm:$0xff]
  %v37 = vld [vmem:[%s1 + $0x10] sm:$0xff]
  %v38 = vld [vmem:[%s1 + $0x18] sm:$0xff]
  %v39 = vld [vmem:[%s1 + $0x20] sm:$0xff]
  %v40 = vld [vmem:[%s1 + $0x28] sm:$0xff]
  %v41 = vld [vmem:[%s1 + $0x30] sm:$0xff]
  %v42 = vld [vmem:[%s1 + $0x38] sm:$0xff]
  %v43 = vld [vmem:[%s1 + $0x40] sm:$0xff]
  %v44 = vld [vmem:[%s1 + $0x48] sm:$0xff]
  %v45 = vld [vmem:[%s1 + $0x50] sm:$0xff]
  %v46 = vld [vmem:[%s1 + $0x58] sm:$0xff]
  %v47 = vld [vmem:[%s1 + $0x60] sm:$0xff]
  %v48 = vld [vmem:[%s1 + $0x68] sm:$0xff]
  %v49 = vld [vmem:[%s1 + $0x70] sm:$0xff]
  %v50 = vld [vmem:[%s1 + $0x78] sm:$0xff]
  %v51 = vld [vmem:[%s2] sm:$0x1]
  %v53 = vlaneseq
  %v54 = vshrl.u32 %v53, 7
  %v55 = vsub.s32 0, %v54
  %v56 = vrot.slane %v51, %v55
  %58 = vmatprep.subr.mxu0 0.0
  %59 = vmatpush1.msra.mxu0 %v50
  %60 = vmatprep.subr.mxu0 0.0
  %61 = vmatpush1.msra.mxu0 %v49
  %62 = vmatprep.subr.mxu0 0.0
  %63 = vmatpush1.msra.mxu0 %v48
  %64 = vmatprep.subr.mxu0 0.0
  %65 = vmatpush1.msra.mxu0 %v47
  %66 = vmatprep.subr.mxu0 0.0
  %67 = vmatpush1.msra.mxu0 %v46
  %68 = vmatprep.subr.mxu0 0.0
  %69 = vmatpush1.msra.mxu0 %v45
  %70 = vmatprep.subr.mxu0 0.0
  %71 = vmatpush1.msra.mxu0 %v44
  %72 = vmatprep.subr.mxu0 0.0
  %73 = vmatpush1.msra.mxu0 %v43
  %74 = vmatprep.subr.mxu0 0.0
  %75 = vmatpush1.msra.mxu0 %v42
  %76 = vmatprep.subr.mxu0 0.0
  %77 = vmatpush1.msra.mxu0 %v41
  %78 = vmatprep.subr.mxu0 0.0
  %79 = vmatpush1.msra.mxu0 %v40
  %80 = vmatprep.subr.mxu0 0.0
  %81 = vmatpush1.msra.mxu0 %v39
  %82 = vmatprep.subr.mxu0 0.0
  %83 = vmatpush1.msra.mxu0 %v38
  %84 = vmatprep.subr.mxu0 0.0
  %85 = vmatpush1.msra.mxu0 %v37
  %86 = vmatprep.subr.mxu0 0.0
  %87 = vmatpush1.msra.mxu0 %v36
  %88 = vmatprep.subr.mxu0 0.0
  %89 = vmatpush1.msra.mxu0 %v35
  %90 = vmatprep.subr.mxu0 0.0
  %91 = vmatpush2.msra.mxu0 0.0
  %92 = vmatprep.subr.mxu0 0.0
  %93 = vmatpush2.msra.mxu0 0.0
  %94 = vmatprep.subr.mxu0 0.0
  %95 = vmatpush2.msra.mxu0 0.0
  %96 = vmatprep.subr.mxu0 0.0
  %97 = vmatpush2.msra.mxu0 0.0
  %98 = vmatprep.subr.mxu0 0.0
  %99 = vmatpush2.msra.mxu0 0.0
  %100 = vmatprep.subr.mxu0 0.0
  %101 = vmatpush2.msra.mxu0 0.0
  %102 = vmatprep.subr.mxu0 0.0
  %103 = vmatpush2.msra.mxu0 0.0
  %104 = vmatprep.subr.mxu0 0.0
  %105 = vmatpush2.msra.mxu0 0.0
  %106 = vmatprep.subr.mxu0 0.0
  %107 = vmatpush2.msra.mxu0 0.0
  %108 = vmatprep.subr.mxu0 0.0
  %109 = vmatpush2.msra.mxu0 0.0
  %110 = vmatprep.subr.mxu0 0.0
  %111 = vmatpush2.msra.mxu0 0.0
  %112 = vmatprep.subr.mxu0 0.0
  %113 = vmatpush2.msra.mxu0 0.0
  %114 = vmatprep.subr.mxu0 0.0
  %115 = vmatpush2.msra.mxu0 0.0
  %116 = vmatprep.subr.mxu0 0.0
  %117 = vmatpush2.msra.mxu0 0.0
  %118 = vmatprep.subr.mxu0 0.0
  %119 = vmatpush2.msra.mxu0 0.0
  %120 = vmatprep.subr.mxu0 0.0
  %121 = vmatpush2.msra.mxu0 0.0
  %122 = vmatprep.mubr.f32.mxu0 0.0
  %123 = vmatmul.mubr.f32.gmra.mxu0 %v33
  %v124 = vpop.f32.mrf.mxu0
  %v125 = vadd.f32 %v56, %v124
  %v126 = vpop.f32.mrf.mxu0
  %127 = vmatprep.mubr.f32.mxu0 0.0
  %128 = vmatmul.mubr.f32.gmra.mxu0 %v34
  %v129 = vpop.f32.mrf.mxu0
  %v130 = vadd.f32 %v56, %v129
  %v131 = vpop.f32.mrf.mxu0
  %132 = vdwg.mxu0
  %v133 = vmul.f32 %v125, 0.5
  %v134 = vmul.f32 %v130, 0.5
  %v135 = vmul.f32 %v125, 0.70710677
  %v136 = vmul.f32 %v130, 0.70710677
  %v137 = verf.f32.pop %v135
  %v138 = verf.f32.pop %v136
  %v139 = vadd.f32 %v137, 1.0
  %v140 = vadd.f32 %v138, 1.0
  %v141 = vmul.f32 %v133, %v139
  %v142 = vmul.f32 %v134, %v140
  %v143 = vld [vmem:[#allocation2] sm:$0xff]
  %v144 = vld [vmem:[#allocation2 + $0x8] sm:$0xff]
  %v145 = vld [vmem:[%s3] sm:$0xff]
  %v146 = vld [vmem:[%s3 + $0x8] sm:$0xff]
  %v147 = vld [vmem:[%s3 + $0x10] sm:$0xff]
  %v148 = vld [vmem:[%s3 + $0x18] sm:$0xff]
  %v149 = vld [vmem:[%s3 + $0x20] sm:$0xff]
  %v150 = vld [vmem:[%s3 + $0x28] sm:$0xff]
  %v151 = vld [vmem:[%s3 + $0x30] sm:$0xff]
  %v152 = vld [vmem:[%s3 + $0x38] sm:$0xff]
  %v153 = vld [vmem:[%s3 + $0x40] sm:$0xff]
  %v154 = vld [vmem:[%s3 + $0x48] sm:$0xff]
  %v155 = vld [vmem:[%s3 + $0x50] sm:$0xff]
  %v156 = vld [vmem:[%s3 + $0x58] sm:$0xff]
  %v157 = vld [vmem:[%s3 + $0x60] sm:$0xff]
  %v158 = vld [vmem:[%s3 + $0x68] sm:$0xff]
  %v159 = vld [vmem:[%s3 + $0x70] sm:$0xff]
  %v160 = vld [vmem:[%s3 + $0x78] sm:$0xff]
  %161 = vmatprep.subr.mxu0 0.0
  %162 = vmatpush1.msra.mxu0 %v160
  %163 = vmatprep.subr.mxu0 0.0
  %164 = vmatpush1.msra.mxu0 %v159
  %165 = vmatprep.subr.mxu0 0.0
  %166 = vmatpush1.msra.mxu0 %v158
  %167 = vmatprep.subr.mxu0 0.0
  %168 = vmatpush1.msra.mxu0 %v157
  %169 = vmatprep.subr.mxu0 0.0
  %170 = vmatpush1.msra.mxu0 %v156
  %171 = vmatprep.subr.mxu0 0.0
  %172 = vmatpush1.msra.mxu0 %v155
  %173 = vmatprep.subr.mxu0 0.0
  %174 = vmatpush1.msra.mxu0 %v154
  %175 = vmatprep.subr.mxu0 0.0
  %176 = vmatpush1.msra.mxu0 %v153
  %177 = vmatprep.subr.mxu0 0.0
  %178 = vmatpush1.msra.mxu0 %v152
  %179 = vmatprep.subr.mxu0 0.0
  %180 = vmatpush1.msra.mxu0 %v151
  %181 = vmatprep.subr.mxu0 0.0
  %182 = vmatpush1.msra.mxu0 %v150
  %183 = vmatprep.subr.mxu0 0.0
  %184 = vmatpush1.msra.mxu0 %v149
  %185 = vmatprep.subr.mxu0 0.0
  %186 = vmatpush1.msra.mxu0 %v148
  %187 = vmatprep.subr.mxu0 0.0
  %188 = vmatpush1.msra.mxu0 %v147
  %189 = vmatprep.subr.mxu0 0.0
  %190 = vmatpush1.msra.mxu0 %v146
  %191 = vmatprep.subr.mxu0 0.0
  %192 = vmatpush1.msra.mxu0 %v145
  %193 = vmatprep.subr.mxu0 0.0
  %194 = vmatpush2.msra.mxu0 0.0
  %195 = vmatprep.subr.mxu0 0.0
  %196 = vmatpush2.msra.mxu0 0.0
  %197 = vmatprep.subr.mxu0 0.0
  %198 = vmatpush2.msra.mxu0 0.0
  %199 = vmatprep.subr.mxu0 0.0
  %200 = vmatpush2.msra.mxu0 0.0
  %201 = vmatprep.subr.mxu0 0.0
  %202 = vmatpush2.msra.mxu0 0.0
  %203 = vmatprep.subr.mxu0 0.0
  %204 = vmatpush2.msra.mxu0 0.0
  %205 = vmatprep.subr.mxu0 0.0
  %206 = vmatpush2.msra.mxu0 0.0
  %207 = vmatprep.subr.mxu0 0.0
  %208 = vmatpush2.msra.mxu0 0.0
  %209 = vmatprep.subr.mxu0 0.0
  %210 = vmatpush2.msra.mxu0 0.0
  %211 = vmatprep.subr.mxu0 0.0
  %212 = vmatpush2.msra.mxu0 0.0
  %213 = vmatprep.subr.mxu0 0.0
  %214 = vmatpush2.msra.mxu0 0.0
  %215 = vmatprep.subr.mxu0 0.0
  %216 = vmatpush2.msra.mxu0 0.0
  %217 = vmatprep.subr.mxu0 0.0
  %218 = vmatpush2.msra.mxu0 0.0
  %219 = vmatprep.subr.mxu0 0.0
  %220 = vmatpush2.msra.mxu0 0.0
  %221 = vmatprep.subr.mxu0 0.0
  %222 = vmatpush2.msra.mxu0 0.0
  %223 = vmatprep.subr.mxu0 0.0
  %224 = vmatpush2.msra.mxu0 0.0
  %225 = vmatprep.mubr.f32.mxu0 0.0
  %226 = vmatmul.mubr.f32.gmra.mxu0 %v141
  %v227 = vpop.f32.mrf.mxu0
  %v228 = vadd.f32 0.0, %v227
  %v229 = vpop.f32.mrf.mxu0
  %230 = vmatprep.mubr.f32.mxu0 0.0
  %231 = vmatmul.mubr.f32.gmra.mxu0 %v142
  %v232 = vpop.f32.mrf.mxu0
  %v233 = vadd.f32 0.0, %v232
  %v234 = vpop.f32.mrf.mxu0
  %235 = vdwg.mxu0
  %v236 = vadd.f32 %v143, %v228
  %v237 = vadd.f32 %v144, %v233
  %238 = vst [vmem:[#allocation2] sm:$0xff] %v236
  %239 = vst [vmem:[#allocation2 + $0x8] sm:$0xff] %v237
  // Predicated region
  $region26: #{mlp_forward.1} parent=0 // pred_check
    %p240 = pneg %p20
  $region27: #{mlp_forward.1} parent=0 // pred_check_branch
    %242 = sbr.rel (%p240) target = $region29
  $region28: #{mlp_forward.1} parent=0 // pred_region
    %v243 = vld [vmem:[#allocation2] sm:$0xff]
    %v244 = vld [vmem:[#allocation2 + $0x8] sm:$0xff]
    %245 = vst [vmem:[%s5] sm:$0xff] %v243
    %246 = vst [vmem:[%s5 + $0x8] sm:$0xff] %v244
  $region29: #{mlp_forward.1} parent=0 // pred_fallthru
    _
  // Predicated region
  $region30: #{mlp_forward.1} parent=0 // pred_check
    _
  $region31: #{mlp_forward.1} parent=0 // pred_check_branch
    %248 = sbr.rel (0) target = $region33
  $region32: #{mlp_forward.1} parent=0 // pred_region
    _
  $region33: #{mlp_forward.1} parent=0 // pred_fallthru
    _
  // Predicated region
  $region34: #{mlp_forward.1} parent=0 // pred_check
    _
  $region35: #{mlp_forward.1} parent=0 // pred_check_branch
    %250 = sbr.rel (0) target = $region37
  $region36: #{mlp_forward.1} parent=0 // pred_region
    _
  $region37: #{mlp_forward.1} parent=0 // pred_fallthru
    _

</llo_original>
